<compile_context>
chip_gen: v7x
topology: tpu7x:2x2x1
jax: 0.10.0
libtpu: 0.0.40
codegen_flags: <defaults>
</compile_context>

<pallas_src>
import numpy as np
import jax
import jax.numpy as jnp
from jax.experimental import pallas as pl
from jax.experimental.pallas import tpu as pltpu


# --------------------------------------------------------------------------
# Generation-aware VMEM budgeting
# --------------------------------------------------------------------------

def _tpu_vmem_capacity_bytes():
    try:
        info = pltpu.get_tpu_info()
        for attr in ("vmem_capacity_bytes", "vmem_bytes", "vmem_size_bytes"):
            v = getattr(info, attr, None)
            if v:
                return int(v)
    except Exception:
        pass
    return 64 * 1024 * 1024          # conservative default (v7x per-TC VMEM)


_VMEM_TOTAL = _tpu_vmem_capacity_bytes()
# Scoped-VMEM limit requested per pallas_call: 64 MiB on v5e/v6e (128 MiB
# physical), 32 MiB on v7x (64 MiB physical).
_VMEM_LIMIT = int(min(max(_VMEM_TOTAL // 2, 8 * 1024 * 1024), 64 * 1024 * 1024))
# Working-set budget for double-buffered tiles + resident weight buffers.
_TILE_BUDGET = (_VMEM_LIMIT * 3) // 4


def _lane_tile(n, bytes_per_col, reserved=0):
    """Largest lane tile (multiple of 128, or the full dim) within budget."""
    budget = max(0, _TILE_BUDGET - reserved)
    cap = budget // max(1, bytes_per_col)
    if cap >= n:
        return n
    return max(128, (cap // 128) * 128)


def _row_tile(r, bytes_per_row, reserved=0):
    """Largest sublane tile (multiple of 8/128, or the full dim) within budget."""
    budget = max(0, _TILE_BUDGET - reserved)
    cap = budget // max(1, bytes_per_row)
    if cap >= r:
        return r
    if cap >= 128:
        return (cap // 128) * 128
    return max(8, (cap // 8) * 8)


def _split_for_megacore(dim, tile, quantum, min_dim=512):
    """If a parallel axis forms a single block, split it in two so both v7x
    TensorCores get work.  No-op for small dims (per-step overhead dominates)
    and on 1-TC chips it is harmless."""
    if pl.cdiv(dim, tile) >= 2 or dim < min_dim:
        return tile
    half = (dim + 1) // 2
    return max(quantum, ((half + quantum - 1) // quantum) * quantum)


# --------------------------------------------------------------------------
# Matmul kernels (shared by inv1x1 and the float-dtype shuffles)
# --------------------------------------------------------------------------

def _mix_channel_first_kernel(w_ref, x_ref, o_ref):
    # x block (1, C, TN): z = W @ x[0]; the lane-dense N tile sits on lanes.
    o_ref[0] = jnp.dot(
        w_ref[...], x_ref[0], preferred_element_type=jnp.float32
    ).astype(o_ref.dtype)


def _rows_mix_kernel(w_ref, x_ref, o_ref):
    # x block (TM, K), w (Cout, K): out[m, i] = sum_k x[m, k] * w[i, k]
    # (contract directly against W's second axis -- no transposed copy of W).
    o_ref[...] = jax.lax.dot_general(
        x_ref[...], w_ref[...],
        dimension_numbers=(((1,), (1,)), ((), ())),
        preferred_element_type=jnp.float32,
    ).astype(o_ref.dtype)


def _rows_mix_acc_kernel(w_ref, x_ref, o_ref, acc_ref):
    # K-tiled variant (large C): f32 accumulator, init/finalize via pl.when.
    @pl.when(pl.program_id(1) == 0)
    def _():
        acc_ref[...] = jnp.zeros_like(acc_ref)

    acc_ref[...] += jax.lax.dot_general(
        x_ref[...], w_ref[...],
        dimension_numbers=(((1,), (1,)), ((), ())),
        preferred_element_type=jnp.float32,
    )

    @pl.when(pl.program_id(1) == pl.num_programs(1) - 1)
    def _():
        o_ref[...] = acc_ref[...].astype(o_ref.dtype)


def _channel_first_mix(w, x3):
    """z[b,i,n] = sum_j w[i,j] x3[b,j,n] for x3 of shape (B, C, N)."""
    B, C, N = x3.shape
    itemsize = x3.dtype.itemsize
    reserved = 2 * C * C * w.dtype.itemsize          # resident W (double buffer)
    tn = _lane_tile(N, 4 * C * itemsize, reserved=reserved)   # 2 in + 2 out bufs
    nt = pl.cdiv(N, tn)
    if B * nt < 2:                                   # keep both v7x TCs busy
        tn = _split_for_megacore(N, tn, 128)
        nt = pl.cdiv(N, tn)
    grid = (B, nt)
    return pl.pallas_call(
        _mix_channel_first_kernel,
        out_shape=jax.ShapeDtypeStruct((B, C, N), x3.dtype),
        grid_spec=pltpu.PrefetchScalarGridSpec(
            num_scalar_prefetch=0,
            grid=grid,
            in_specs=[
                pl.BlockSpec((C, C), lambda b, n: (0, 0)),          # W resident
                pl.BlockSpec((1, C, tn), lambda b, n: (b, 0, n)),   # N-tiled slab
            ],
            out_specs=pl.BlockSpec((1, C, tn), lambda b, n: (b, 0, n)),
        ),
        compiler_params=pltpu.CompilerParams(
            dimension_semantics=("parallel", "parallel"),
            vmem_limit_bytes=_VMEM_LIMIT),
        cost_estimate=pl.CostEstimate(
            flops=2 * B * C * C * N,
            transcendentals=0,
            bytes_accessed=2 * B * C * N * itemsize + C * C * w.dtype.itemsize),
    )(w, x3)


def _rows_mix(w, x2):
    """out[m, i] = sum_k x2[m, k] * w[i, k]   (x2: (R, K), w: (Cout, K))."""
    R, K = x2.shape
    cout = w.shape[0]
    itemsize = x2.dtype.itemsize
    w_item = w.dtype.itemsize

    # K tiling only for large K so the resident weight block stays bounded.
    tk = K if K <= 1024 else 512
    nk = pl.cdiv(K, tk)

    reserved = 2 * cout * tk * w_item                 # weight block (double buf)
    per_row = 2 * tk * itemsize + 2 * cout * itemsize
    if nk > 1:
        per_row += cout * 4                           # f32 accumulator scratch
    tm = _row_tile(R, per_row, reserved=reserved)
    if pl.cdiv(R, tm) < 2:
        tm = _split_for_megacore(R, tm, 128)
    grid_m = pl.cdiv(R, tm)

    flops = 2 * R * K * cout
    bytes_acc = R * (K + cout) * itemsize + cout * K * w_item

    if nk == 1:
        return pl.pallas_call(
            _rows_mix_kernel,
            out_shape=jax.ShapeDtypeStruct((R, cout), x2.dtype),
            grid_spec=pltpu.PrefetchScalarGridSpec(
                num_scalar_prefetch=0,
                grid=(grid_m,),
                in_specs=[
                    pl.BlockSpec((cout, K), lambda m: (0, 0)),   # weight resident
                    pl.BlockSpec((tm, K), lambda m: (m, 0)),
                ],
                out_specs=pl.BlockSpec((tm, cout), lambda m: (m, 0)),
            ),
            compiler_params=pltpu.CompilerParams(
                dimension_semantics=("parallel",),
                vmem_limit_bytes=_VMEM_LIMIT),
            cost_estimate=pl.CostEstimate(
                flops=flops, transcendentals=0, bytes_accessed=bytes_acc),
        )(w, x2)

    return pl.pallas_call(
        _rows_mix_acc_kernel,
        out_shape=jax.ShapeDtypeStruct((R, cout), x2.dtype),
        grid_spec=pltpu.PrefetchScalarGridSpec(
            num_scalar_prefetch=0,
            grid=(grid_m, nk),
            in_specs=[
                pl.BlockSpec((cout, tk), lambda m, k: (0, k)),
                pl.BlockSpec((tm, tk), lambda m, k: (m, k)),
            ],
            out_specs=pl.BlockSpec((tm, cout), lambda m, k: (m, 0)),
            scratch_shapes=[pltpu.VMEM((tm, cout), jnp.float32)],
        ),
        compiler_params=pltpu.CompilerParams(
            dimension_semantics=("parallel", "arbitrary"),
            vmem_limit_bytes=_VMEM_LIMIT),
        cost_estimate=pl.CostEstimate(
            flops=flops, transcendentals=0, bytes_accessed=bytes_acc),
    )(w, x2)


def _channel_last_mix(w, w_eff, x):
    """z[..., i] = sum_j w[i,j] x[..., j] for channel-last x (any rank)."""
    shape = x.shape
    C = shape[-1]
    M = int(np.prod(shape[:-1])) if x.ndim > 1 else 1
    x2 = x.reshape(M, C)
    if w_eff is not None:
        # Lane-packing: pad rows to a multiple of G = 128/C samples, re-view the
        # contiguous buffer as (.., 128), and mix with kron(I_G, W) -> fully
        # lane-dense loads AND stores (avoids masked vst.msk for narrow C).
        G = w_eff.shape[0] // C
        M_pad = ((M + G - 1) // G) * G
        if M_pad != M:
            x2 = jnp.pad(x2, ((0, M_pad - M), (0, 0)))
        xp = x2.reshape(M_pad * C // 128, 128)
        zp = _rows_mix(w_eff, xp)
        z2 = zp.reshape(M_pad, C)
        if M_pad != M:
            z2 = z2[:M]
        return z2.reshape(shape)
    # General fallback: (M, C) rows, contract against W's second axis.
    z2 = _rows_mix(w, x2)
    return z2.reshape(shape)


# --------------------------------------------------------------------------
# Exact slice-gather kernels (integer dtypes only; MXU has no int path on v7x)
# --------------------------------------------------------------------------

def _make_sublane_gather_kernel(idx):
    idx = tuple(int(i) for i in idx)

    def kernel(x_ref, o_ref):
        x = x_ref[0]                                          # (C, TN)
        o_ref[0] = jnp.concatenate([x[d:d + 1, :] for d in idx], axis=0)

    return kernel


def _make_lane_gather_kernel(idx):
    idx = tuple(int(i) for i in idx)

    def kernel(x_ref, o_ref):
        x = x_ref[...]                                        # (TM, C)
        o_ref[...] = jnp.concatenate([x[:, d:d + 1] for d in idx], axis=1)

    return kernel


def _gather_channel_first(x3, idx):
    B, C, N = x3.shape
    itemsize = x3.dtype.itemsize
    tn = _lane_tile(N, 4 * C * itemsize)
    nt = pl.cdiv(N, tn)
    if B * nt < 2:
        tn = _split_for_megacore(N, tn, 128)
        nt = pl.cdiv(N, tn)
    return pl.pallas_call(
        _make_sublane_gather_kernel(idx),
        out_shape=jax.ShapeDtypeStruct((B, C, N), x3.dtype),
        grid_spec=pltpu.PrefetchScalarGridSpec(
            num_scalar_prefetch=0,
            grid=(B, nt),
            in_specs=[pl.BlockSpec((1, C, tn), lambda b, n: (b, 0, n))],
            out_specs=pl.BlockSpec((1, C, tn), lambda b, n: (b, 0, n)),
        ),
        compiler_params=pltpu.CompilerParams(
            dimension_semantics=("parallel", "parallel"),
            vmem_limit_bytes=_VMEM_LIMIT),
        cost_estimate=pl.CostEstimate(
            flops=0, transcendentals=0, bytes_accessed=2 * B * C * N * itemsize),
    )(x3)


def _gather_channel_last(x2, idx):
    R, C = x2.shape
    itemsize = x2.dtype.itemsize
    tm = _row_tile(R, 4 * C * itemsize)
    if pl.cdiv(R, tm) < 2:
        tm = _split_for_megacore(R, tm, 128)
    return pl.pallas_call(
        _make_lane_gather_kernel(idx),
        out_shape=jax.ShapeDtypeStruct((R, C), x2.dtype),
        grid_spec=pltpu.PrefetchScalarGridSpec(
            num_scalar_prefetch=0,
            grid=(pl.cdiv(R, tm),),
            in_specs=[pl.BlockSpec((tm, C), lambda m: (m, 0))],
            out_specs=pl.BlockSpec((tm, C), lambda m: (m, 0)),
        ),
        compiler_params=pltpu.CompilerParams(
            dimension_semantics=("parallel",),
            vmem_limit_bytes=_VMEM_LIMIT),
        cost_estimate=pl.CostEstimate(
            flops=0, transcendentals=0, bytes_accessed=2 * R * C * itemsize),
    )(x2)


# --------------------------------------------------------------------------
# Module analogue
# --------------------------------------------------------------------------

class Permutation:
    """JAX/Pallas analogue of the PyTorch `Permutation` module (forward only).

    permutation in {'reverse', 'random', 'inv1x1'}, dim in {1, 2, 3, -1}
    (inv1x1 supports dim in {1, 2, -1}, exactly as the reference module).
    """

    def __init__(self, permutation: str, n_channel: int, dim: int, seed: int = 0):
        assert permutation in ["reverse", "random", "inv1x1"]
        assert dim in [-1, 1, 2, 3]
        if permutation == "inv1x1" and dim not in [-1, 1, 2]:
            raise NotImplementedError(f"Unsupport dim {dim} for InvertibleConv1x1 Layer.")
        self.permutation = permutation
        self.n_channel = n_channel
        self.dim = dim
        rng = np.random.default_rng(seed)
        C = n_channel

        if permutation == "inv1x1":
            w_np = rng.standard_normal((C, C))
            w_np = np.linalg.qr(w_np)[0].astype(np.float32)
            self.direct_idx = None
            self.W = jnp.asarray(w_np)
            # Hoisted: slogdet is constant per module; forward only multiplies
            # by x.shape[-1].
            # TODO(synk): slogdet has no clean Pallas equivalent; tiny CxC done on host.
            self._slogabsdet = float(np.linalg.slogdet(w_np.astype(np.float64))[1])
        else:
            direct_idx = np.arange(C - 1, -1, -1).astype(np.int64)
            if permutation == "random":
                rng.shuffle(direct_idx)
            self.direct_idx = direct_idx
            self.W = None
            self._slogabsdet = None
            # One-hot permutation matrix: (P @ x)[i] = x[idx[i]]  (float shuffles
            # run on the otherwise-idle MXU instead of an XLU permute network).
            w_np = np.zeros((C, C), dtype=np.float32)
            w_np[np.arange(C), direct_idx] = 1.0

        self._w_np = w_np
        # kron(I_G, W) for the lane-packing fast path (hoisted out of forward).
        if C < 128 and 128 % C == 0:
            G = 128 // C
            self._w_eff_np = np.kron(np.eye(G, dtype=np.float32), w_np)
        else:
            self._w_eff_np = None
        # Per-dtype device caches (hoists astype / upload out of forward).
        self._w_cache = {}
        self._w_eff_cache = {}

    # -- cached, dtype-matched weights ------------------------------------
    def _weights(self, dtype):
        key = np.dtype(dtype)
        if key not in self._w_cache:
            self._w_cache[key] = jnp.asarray(self._w_np, dtype=key)
            self._w_eff_cache[key] = (
                jnp.asarray(self._w_eff_np, dtype=key)
                if self._w_eff_np is not None else None)
        return self._w_cache[key], self._w_eff_cache[key]

    # -- MXU mixing path (inv1x1, and float-dtype shuffles via one-hot P) --
    def _mix(self, x):
        w, w_eff = self._weights(x.dtype)
        axis = self.dim if self.dim >= 0 else x.ndim + self.dim
        assert x.shape[axis] == self.n_channel
        if axis == x.ndim - 1:
            return _channel_last_mix(w, w_eff, x)
        lead = int(np.prod(x.shape[:axis])) if axis > 0 else 1
        trail = int(np.prod(x.shape[axis + 1:]))
        z3 = _channel_first_mix(w, x.reshape(lead, self.n_channel, trail))
        return z3.reshape(x.shape)

    # -- exact gather path (integer dtypes) --------------------------------
    def _gather(self, x):
        idx = self.direct_idx
        axis = self.dim if self.dim >= 0 else x.ndim + self.dim
        assert x.shape[axis] == self.n_channel
        if axis == x.ndim - 1:
            lead = int(np.prod(x.shape[:-1])) if x.ndim > 1 else 1
            z2 = _gather_channel_last(x.reshape(lead, self.n_channel), idx)
            return z2.reshape(x.shape)
        lead = int(np.prod(x.shape[:axis])) if axis > 0 else 1
        trail = int(np.prod(x.shape[axis + 1:]))
        z3 = _gather_channel_first(x.reshape(lead, self.n_channel, trail), idx)
        return z3.reshape(x.shape)

    def forward(self, x, _c=None):
        if self.permutation == "inv1x1":
            z = self._mix(x)
            # Reference multiplies slogdet(W) by x.shape[-1] regardless of dim;
            # replicated exactly (for dim=2/-1 that factor is C, as in PyTorch).
            logdet = jnp.asarray(self._slogabsdet * x.shape[-1], dtype=jnp.float32)
            return z, logdet
        if jnp.issubdtype(x.dtype, jnp.floating):
            return self._mix(x), None        # one-hot permutation on the MXU
        return self._gather(x), None         # exact slice gather for int dtypes


# --------------------------------------------------------------------------
# Driver
# --------------------------------------------------------------------------

if __name__ == "__main__":
    key = jax.random.PRNGKey(0)
    k1, k2, k3, k4, k5, k6 = jax.random.split(key, 6)
    B, C, N = 2, 8, 128

    # ---- inv1x1, dim=1 : x is (B, C, N), channel-first ----
    x1 = jax.random.normal(k1, (B, C, N), dtype=jnp.float32)
    perm_inv = Permutation("inv1x1", C, dim=1, seed=0)
    z1, logdet1 = perm_inv.forward(x1, None)
    z1 = jax.block_until_ready(z1)
    z1_ref = jnp.einsum("ij,bjn->bin", perm_inv.W, x1)
    np.testing.assert_allclose(np.asarray(z1), np.asarray(z1_ref), rtol=1e-5, atol=1e-5)
    logdet_ref = jnp.linalg.slogdet(perm_inv.W)[1] * x1.shape[-1]
    np.testing.assert_allclose(float(logdet1), float(logdet_ref), atol=1e-3)

    # ---- inv1x1, dim=-1 : (B, N, C), lane-packed path (no padding needed) ----
    x2 = jax.random.normal(k2, (B, N, C), dtype=jnp.float32)
    perm_inv2 = Permutation("inv1x1", C, dim=-1, seed=0)
    z2, _ = perm_inv2.forward(x2, None)
    z2 = jax.block_until_ready(z2)
    z2_ref = jnp.einsum("ij,bnj->bni", perm_inv2.W, x2)
    np.testing.assert_allclose(np.asarray(z2), np.asarray(z2_ref), rtol=1e-5, atol=1e-5)

    # ---- inv1x1, dim=2 : odd shape exercises the padded lane-packing path ----
    x3 = jax.random.normal(k3, (3, 5, C), dtype=jnp.float32)
    perm_inv3 = Permutation("inv1x1", C, dim=2, seed=0)
    z3, _ = perm_inv3.forward(x3, None)
    z3 = jax.block_until_ready(z3)
    z3_ref = jnp.einsum("ij,bnj->bni", perm_inv3.W, x3)
    np.testing.assert_allclose(np.asarray(z3), np.asarray(z3_ref), rtol=1e-5, atol=1e-5)

    # ---- reverse shuffle, dim=1, float -> one-hot permutation on the MXU ----
    perm_rev = Permutation("reverse", C, dim=1, seed=0)
    z4, logdet4 = perm_rev.forward(x1, None)
    z4 = jax.block_until_ready(z4)
    np.testing.assert_allclose(np.asarray(z4), np.asarray(x1[:, perm_rev.direct_idx]),
                               rtol=1e-5, atol=1e-6)
    assert logdet4 is None

    # ---- random shuffle, dim=-1, float -> lane-packed one-hot matmul ----
    perm_rand = Permutation("random", C, dim=-1, seed=3)
    z5, _ = perm_rand.forward(x2, None)
    z5 = jax.block_until_ready(z5)
    np.testing.assert_allclose(np.asarray(z5), np.asarray(x2[..., perm_rand.direct_idx]),
                               rtol=1e-5, atol=1e-6)

    # ---- random shuffle, dim=3 on a 4-D float tensor ----
    x4 = jax.random.normal(k4, (2, 3, 4, C), dtype=jnp.float32)
    perm_rand3 = Permutation("random", C, dim=3, seed=5)
    z6, _ = perm_rand3.forward(x4, None)
    z6 = jax.block_until_ready(z6)
    np.testing.assert_allclose(np.asarray(z6), np.asarray(x4[..., perm_rand3.direct_idx]),
                               rtol=1e-5, atol=1e-6)

    # ---- integer dtype: exact slice-gather fallback (sublane + lane) ----
    xi1 = jax.random.randint(k5, (B, C, N), 0, 1000, dtype=jnp.int32)
    perm_rev_i = Permutation("reverse", C, dim=1, seed=0)
    z7, _ = perm_rev_i.forward(xi1, None)
    z7 = jax.block_until_ready(z7)
    np.testing.assert_array_equal(np.asarray(z7), np.asarray(xi1[:, perm_rev_i.direct_idx]))

    xi2 = jax.random.randint(k6, (B, 16, C), 0, 1000, dtype=jnp.int32)
    perm_rand_i = Permutation("random", C, dim=-1, seed=7)
    z8, _ = perm_rand_i.forward(xi2, None)
    z8 = jax.block_until_ready(z8)
    np.testing.assert_array_equal(np.asarray(z8), np.asarray(xi2[..., perm_rand_i.direct_idx]))

    print("KERNEL_OK")
</pallas_src>

<mosaic_0001>
module attributes {stable_mosaic.version = 11 : i64} {
  func.func @_mix_channel_first_kernel(%arg0: i32, %arg1: i32, %arg2: memref<8x8xf32, #tpu.memory_space<vmem>>, %arg3: memref<1x8x128xf32, #tpu.memory_space<vmem>>, %arg4: memref<1x8x128xf32, #tpu.memory_space<vmem>>) attributes {dimension_semantics = [#tpu.dimension_semantics<parallel>, #tpu.dimension_semantics<parallel>], iteration_bounds = array<i64: 2, 1>, scalar_prefetch = 0 : i64, scratch_operands = 0 : i64, tpu.core_type = #tpu.core_type<tc>, window_params = [{pipeline_mode = #tpu.pipeline_mode<synchronous>, transform_indices = @transform_0, window_bounds = array<i64: 8, 8>}, {transform_indices = @transform_1, window_bounds = array<i64: 1, 8, 128>}, {transform_indices = @transform_2, window_bounds = array<i64: 1, 8, 128>}]} {
    %c0 = arith.constant 0 : index
    %c0_0 = arith.constant 0 : index
    %0 = vector.load %arg2[%c0, %c0_0] : memref<8x8xf32, #tpu.memory_space<vmem>>, vector<8x8xf32>
    %c0_1 = arith.constant 0 : index
    %c0_2 = arith.constant 0 : index
    %c0_3 = arith.constant 0 : index
    %1 = vector.load %arg3[%c0_1, %c0_2, %c0_3] : memref<1x8x128xf32, #tpu.memory_space<vmem>>, vector<1x8x128xf32>
    %2 = vector.shape_cast %1 : vector<1x8x128xf32> to vector<8x128xf32>
    %cst = arith.constant dense<0.000000e+00> : vector<8x128xf32>
    %3 = tpu.matmul %0, %2, %cst {dimension_numbers = #tpu.dot_dimension_numbers<[1], [0], [0], [1], [0, 0, 1, 1], [], []>} : vector<8x8xf32>, vector<8x128xf32>, vector<8x128xf32> -> vector<8x128xf32>
    %c0_4 = arith.constant 0 : index
    %c0_5 = arith.constant 0 : index
    %c0_6 = arith.constant 0 : index
    %4 = vector.load %arg4[%c0_4, %c0_5, %c0_6] : memref<1x8x128xf32, #tpu.memory_space<vmem>>, vector<1x8x128xf32>
    %5 = vector.shape_cast %4 : vector<1x8x128xf32> to vector<8x128xf32>
    %6 = vector.shape_cast %3 : vector<8x128xf32> to vector<1x8x128xf32>
    tpu.vector_store %arg4[%c0_4, %c0_5, %c0_6], %6 {strides = array<i32>} : memref<1x8x128xf32, #tpu.memory_space<vmem>>, vector<1x8x128xf32>,
    return
  }
  func.func @transform_0(%arg0: i32, %arg1: i32) -> (i32, i32) {
    %c0_i32 = arith.constant 0 : i32
    %c0_i32_0 = arith.constant 0 : i32
    %c0_i32_1 = arith.constant 0 : i32
    return %c0_i32, %c0_i32_0 : i32, i32
  }
  func.func @transform_1(%arg0: i32, %arg1: i32) -> (i32, i32, i32) {
    %c0_i32 = arith.constant 0 : i32
    %c0_i32_0 = arith.constant 0 : i32
    return %arg0, %c0_i32, %arg1 : i32, i32, i32
  }
  func.func @transform_2(%arg0: i32, %arg1: i32) -> (i32, i32, i32) {
    %c0_i32 = arith.constant 0 : i32
    %c0_i32_0 = arith.constant 0 : i32
    return %arg0, %c0_i32, %arg1 : i32, i32, i32
  }
}

</mosaic_0001>

<llo_original>
// kernel: tpu_custom_call.1
$region0: #{tpu_custom_call.1}
  #allocation0 [shape = 'u32[]', space=smem, size = 0x4, offset = 0x4, fixed_abs, tag = 'smem constant byte address 0x4 - core index']
  #allocation1 [shape = 'u32[144,128]{1,0:T(1,128)}', space=vmem, size = 0x12000, scoped, tag = 'internal scratch']
  %s0 = inlined_call_operand.hbm [shape: f32[8,8], index: 0, kind: input, shape index: {}]
  %s1 = inlined_call_operand.hbm [shape: f32[2,8,128], index: 1, kind: input, shape index: {}]
  %s2 = inlined_call_operand.hbm [shape: f32[2,8,128], index: 2, kind: output, shape index: {}]
  %s3 = sld [smem:[#allocation0]]
  $region49: #{tpu_custom_call.1} parent=0
    _
  %s5 = ssub.s32 1, %s3
  %s6 = scalar_select 0, %s5, %s3
  $region1: #{tpu_custom_call.1} parent=0
    #allocation2 [shape = 'u8[4096]{0}', space=vmem, size = 0x1000, scoped, tag = 'input window, operand 0, single buffered']
    #allocation3 [shape = 's32[2]{0}', space=sflag, size = 0x8, scoped, tag = 'scoped memory for tpu_custom_call.1']
    #allocation4 [shape = 's32[2]{0}', space=sflag, size = 0x8, scoped, tag = 'scoped memory for tpu_custom_call.1']
    #allocation5 [shape = 'u8[8192]{0}', space=vmem, size = 0x2000, scoped, tag = 'input window, operand 1']
    #allocation6 [shape = 's32[2]{0}', space=sflag, size = 0x8, scoped, tag = 'scoped memory for tpu_custom_call.1']
    #allocation7 [shape = 'u8[8192]{0}', space=vmem, size = 0x2000, scoped, tag = 'output window, operand 0']
    %7 = vsyncpa [#allocation3], 0
    %8 = vsyncpa [#allocation6], 0
    %s9 = scalar_lea.sflag [#allocation6], 1
    %10 = vsyncpa %s9, 0
    %11 = vsyncpa [#allocation4], 0
    %s12 = scalar_lea.sflag [#allocation4], 1
    %13 = vsyncpa %s12, 0
    loop: start=0, step=1, limit=4
    $region2: #{tpu_custom_call.1} parent=1 // loop_pre_header
      _
    $region3: #{tpu_custom_call.1} parent=1 // loop_header
      %s15 = sphi 0, %s19
      %p16 = scmp.ge.s32.totalorder %s15, 4
      %s22 = sphi 0, %s34
      %s23 = sphi 0, %s30
      %s24 = sphi 0, %s22
      %s25 = sphi 0, %s23
      %s26 = sphi 0, %s24
      %s27 = sphi 0, %s25
      %s35 = sphi 0, %s35
      %s37 = sphi 0, %s35
      %s38 = sphi 0, %s37
      %s52 = sphi 0, %s38
      %s60 = sphi 0, %s62
      %s63 = sphi 0, %s60
      %s64 = sphi 0, %s63
      %s80 = sphi 0, %s64
      %s88 = sphi 0, %s90
      %s91 = sphi 0, %s88
      %s92 = sphi 0, %s91
      %s108 = sphi 0, %s92
    $region4: #{tpu_custom_call.1} parent=1 // loop_header_branch
      %18 = sbr.rel (%p16) target = $region8
    $region5: #{tpu_custom_call.1} parent=1 // loop_body
      %s20 = ssub.s32 %s15, 1
      %s21 = ssub.s32 %s15, 2
      %s28 = sadd.s32 1, %s23
      %p29 = scmp.ge.s32.totalorder %s28, 1
      %s30 = scalar_select %p29, 0, %s28
      %s31 = sadd.s32 1, %s22
      %s32 = scalar_select %p29, %s31, %s22
      %p33 = scmp.ge.s32.totalorder %s32, 2
      %s34 = scalar_select %p33, 0, %s32
      %s36 = sadd.s32 %s35, 1
      %p39 = scmp.eq.s32.totalorder %s15, 1
      %p40 = scmp.ne.s32.totalorder %s35, %s37
      %p41 = scmp.eq.s32.totalorder %s15, 0
      %p42 = por %p40, %p41
      %p43 = scmp.ne.s32.totalorder %s35, %s37
      %p44 = scmp.eq.s32.totalorder %s20, 1
      %p45 = por %p43, %p44
      %p46 = scmp.ne.s32.totalorder %s37, %s38
      %p47 = scmp.eq.s32.totalorder %s20, 0
      %p48 = por %p46, %p47
      %p49 = scmp.ne.s32.totalorder %s37, %s38
      %p50 = scmp.eq.s32.totalorder %s21, 1
      %p51 = por %p49, %p50
      %p53 = scmp.ne.s32.totalorder %s38, %s52
      %p54 = scmp.eq.s32.totalorder %s21, 0
      %p55 = por %p53, %p54
      %s56 = ssub.s32 %s22, %s34
      %s57 = ssub.s32 %s23, %s30
      %s58 = sor.u32 %s56, %s57
      %p59 = scmp.eq.s32.totalorder %s58, 0
      %s61 = sadd.s32 %s60, 1
      %s62 = scalar_select %p59, %s60, %s61
      %p65 = pneg %p59
      %p66 = scmp.eq.s32.totalorder %s15, 1
      %p67 = por %p65, %p66
      %p68 = scmp.ne.s32.totalorder %s60, %s63
      %p69 = scmp.eq.s32.totalorder %s15, 0
      %p70 = por %p68, %p69
      %p71 = scmp.ne.s32.totalorder %s60, %s63
      %p72 = scmp.eq.s32.totalorder %s20, 1
      %p73 = por %p71, %p72
      %p74 = scmp.ne.s32.totalorder %s63, %s64
      %p75 = scmp.eq.s32.totalorder %s20, 0
      %p76 = por %p74, %p75
      %p77 = scmp.ne.s32.totalorder %s63, %s64
      %p78 = scmp.eq.s32.totalorder %s21, 1
      %p79 = por %p77, %p78
      %p81 = scmp.ne.s32.totalorder %s64, %s80
      %p82 = scmp.eq.s32.totalorder %s21, 0
      %p83 = por %p81, %p82
      %s84 = ssub.s32 %s22, %s34
      %s85 = ssub.s32 %s23, %s30
      %s86 = sor.u32 %s84, %s85
      %p87 = scmp.eq.s32.totalorder %s86, 0
      %s89 = sadd.s32 %s88, 1
      %s90 = scalar_select %p87, %s88, %s89
      %p93 = pneg %p87
      %p94 = scmp.eq.s32.totalorder %s15, 1
      %p95 = por %p93, %p94
      %p96 = scmp.ne.s32.totalorder %s88, %s91
      %p97 = scmp.eq.s32.totalorder %s15, 0
      %p98 = por %p96, %p97
      %p99 = scmp.ne.s32.totalorder %s88, %s91
      %p100 = scmp.eq.s32.totalorder %s20, 1
      %p101 = por %p99, %p100
      %p102 = scmp.ne.s32.totalorder %s91, %s92
      %p103 = scmp.eq.s32.totalorder %s20, 0
      %p104 = por %p102, %p103
      %p105 = scmp.ne.s32.totalorder %s91, %s92
      %p106 = scmp.eq.s32.totalorder %s21, 1
      %p107 = por %p105, %p106
      %p109 = scmp.ne.s32.totalorder %s92, %s108
      %p110 = scmp.eq.s32.totalorder %s21, 0
      %p111 = por %p109, %p110
      %p112 = scmp.le.s32.totalorder 1, %s15
      %p113 = scmp.lt.s32.totalorder %s15, 3
      %p114 = pnand %p112, %p113
      %p115 = pneg %p114
      // Predicated region
      $region9: #{tpu_custom_call.1} parent=5 // pred_check
        _
      $region10: #{tpu_custom_call.1} parent=5 // pred_check_branch
        %117 = sbr.rel (%p114) target = $region12
      $region11: #{tpu_custom_call.1} parent=5 // pred_region
        %s118 = ssub.s32 %s15, 1
        // Predicated region
        $region13: #{tpu_custom_call.1} parent=11 // pred_check
          %p119 = pneg %p48
        $region14: #{tpu_custom_call.1} parent=11 // pred_check_branch
          %121 = sbr.rel (%p119) target = $region16
        $region15: #{tpu_custom_call.1} parent=11 // pred_region
          %s123 = ssub.s32 128, 128
          %124 = vsyncadd [#allocation3], %s123
          %s126 = sshll.u32 [#allocation2], 4
          %s127 = int_to_ptr.vmem [resolvable:$true] %s126
          %129 = dma.hbm_to_vmem [thread:$0]  %s0, 128, %s127, [#allocation3]
        $region16: #{tpu_custom_call.1} parent=11 // pred_fallthru
          _
      $region12: #{tpu_custom_call.1} parent=5 // pred_fallthru
        _
      %p130 = scmp.lt.s32.totalorder %s15, 2
      // Predicated region
      $region17: #{tpu_custom_call.1} parent=5 // pred_check
        %p131 = pneg %p130
      $region18: #{tpu_custom_call.1} parent=5 // pred_check_branch
        %133 = sbr.rel (%p131) target = $region20
      $region19: #{tpu_custom_call.1} parent=5 // pred_region
        // Predicated region
        $region21: #{tpu_custom_call.1} parent=19 // pred_check
          %p134 = pneg %p70
        $region22: #{tpu_custom_call.1} parent=19 // pred_check_branch
          %136 = sbr.rel (%p134) target = $region24
        $region23: #{tpu_custom_call.1} parent=19 // pred_region
          %s137 = sand.u32 %s60, 1
          %s138 = scalar_lea.sflag [#allocation6], %s137
          %s139 = sand.u32 %s60, 1
          %s140 = smul.addr %s139, 8
          %s141 = scalar_lea.vmem [#allocation5], %s140
          %s143 = ssub.s32 128, 128
          %144 = vsyncadd %s138, %s143
          %s145 = sadd.s32 %s23, %s22
          %s146 = smul.addr %s145, 128
          %s147 = scalar_lea.hbm %s1, %s146
          %s149 = sshll.u32 %s141, 4
          %s150 = int_to_ptr.vmem [resolvable:$true] %s149
          %152 = dma.hbm_to_vmem [thread:$0]  %s147, 128, %s150, %s138
        $region24: #{tpu_custom_call.1} parent=19 // pred_fallthru
          _
      $region20: #{tpu_custom_call.1} parent=5 // pred_fallthru
        _
      %p153 = scmp.le.s32.totalorder 1, %s15
      %p154 = scmp.lt.s32.totalorder %s15, 3
      %p155 = pnand %p153, %p154
      %p156 = pneg %p155
      // Predicated region
      $region25: #{tpu_custom_call.1} parent=5 // pred_check
        _
      $region26: #{tpu_custom_call.1} parent=5 // pred_check_branch
        %158 = sbr.rel (%p155) target = $region28
      $region27: #{tpu_custom_call.1} parent=5 // pred_region
        %s159 = ssub.s32 %s15, 1
        // Predicated region
        $region29: #{tpu_custom_call.1} parent=27 // pred_check
          %p160 = pneg %p48
        $region30: #{tpu_custom_call.1} parent=27 // pred_check_branch
          %162 = sbr.rel (%p160) target = $region32
        $region31: #{tpu_custom_call.1} parent=27 // pred_region
          %163 = dma.done [#allocation3], 128
        $region32: #{tpu_custom_call.1} parent=27 // pred_fallthru
          _
        %s164 = sand.u32 %s63, 1
        %s165 = scalar_lea.sflag [#allocation6], %s164
        %s166 = sand.u32 %s63, 1
        %s167 = smul.addr %s166, 8
        %s168 = scalar_lea.vmem [#allocation5], %s167
        // Predicated region
        $region33: #{tpu_custom_call.1} parent=27 // pred_check
          %p169 = pneg %p76
        $region34: #{tpu_custom_call.1} parent=27 // pred_check_branch
          %171 = sbr.rel (%p169) target = $region36
        $region35: #{tpu_custom_call.1} parent=27 // pred_region
          %172 = dma.done %s165, 128
        $region36: #{tpu_custom_call.1} parent=27 // pred_fallthru
          _
        %p173 = pneg %p48
        %p174 = pneg %p45
        %s175 = sand.u32 %s63, 1
        %s176 = scalar_lea.sflag [#allocation6], %s175
        %s177 = sand.u32 %s63, 1
        %s178 = smul.addr %s177, 8
        %s179 = scalar_lea.vmem [#allocation5], %s178
        %p180 = pneg %p76
        %p181 = pneg %p73
        %p182 = pneg %p104
        %p183 = pneg %p101
        %s184 = sand.u32 %s91, 1
        %s185 = scalar_lea.sflag [#allocation4], %s184
        %s186 = sand.u32 %s91, 1
        %s187 = smul.addr %s186, 8
        %s188 = scalar_lea.vmem [#allocation7], %s187
        %v189 = vld [vmem:[#allocation2] sm:$0xff]
        %v190 = vld [vmem:[%s168] sm:$0xff]
        %vm191 = vcmask 64512
        %v193 = vsel %vm191, %v189, 0
        %195 = vmatprep.subr.mxu0 0.0
        %196 = vmatpush1.msra.mxu0 %v190
        %197 = vmatprep.subr.mxu0 0.0
        %198 = vmatpush1.msra.mxu0 0.0
        %199 = vmatprep.subr.mxu0 0.0
        %200 = vmatpush1.msra.mxu0 0.0
        %201 = vmatprep.subr.mxu0 0.0
        %202 = vmatpush1.msra.mxu0 0.0
        %203 = vmatprep.subr.mxu0 0.0
        %204 = vmatpush1.msra.mxu0 0.0
        %205 = vmatprep.subr.mxu0 0.0
        %206 = vmatpush1.msra.mxu0 0.0
        %207 = vmatprep.subr.mxu0 0.0
        %208 = vmatpush1.msra.mxu0 0.0
        %209 = vmatprep.subr.mxu0 0.0
        %210 = vmatpush1.msra.mxu0 0.0
        %211 = vmatprep.subr.mxu0 0.0
        %212 = vmatpush1.msra.mxu0 0.0
        %213 = vmatprep.subr.mxu0 0.0
        %214 = vmatpush1.msra.mxu0 0.0
        %215 = vmatprep.subr.mxu0 0.0
        %216 = vmatpush1.msra.mxu0 0.0
        %217 = vmatprep.subr.mxu0 0.0
        %218 = vmatpush1.msra.mxu0 0.0
        %219 = vmatprep.subr.mxu0 0.0
        %220 = vmatpush1.msra.mxu0 0.0
        %221 = vmatprep.subr.mxu0 0.0
        %222 = vmatpush1.msra.mxu0 0.0
        %223 = vmatprep.subr.mxu0 0.0
        %224 = vmatpush1.msra.mxu0 0.0
        %225 = vmatprep.subr.mxu0 0.0
        %226 = vmatpush1.msra.mxu0 0.0
        %227 = vmatprep.subr.mxu0 0.0
        %228 = vmatpush1.msra.mxu0 0.0
        %229 = vmatprep.subr.mxu0 0.0
        %230 = vmatpush1.msra.mxu0 0.0
        %231 = vmatprep.subr.mxu0 0.0
        %232 = vmatpush1.msra.mxu0 0.0
        %233 = vmatprep.subr.mxu0 0.0
        %234 = vmatpush1.msra.mxu0 0.0
        %235 = vmatprep.subr.mxu0 0.0
        %236 = vmatpush1.msra.mxu0 0.0
        %237 = vmatprep.subr.mxu0 0.0
        %238 = vmatpush1.msra.mxu0 0.0
        %239 = vmatprep.subr.mxu0 0.0
        %240 = vmatpush1.msra.mxu0 0.0
        %241 = vmatprep.subr.mxu0 0.0
        %242 = vmatpush1.msra.mxu0 0.0
        %243 = vmatprep.subr.mxu0 0.0
        %244 = vmatpush1.msra.mxu0 0.0
        %245 = vmatprep.subr.mxu0 0.0
        %246 = vmatpush1.msra.mxu0 0.0
        %247 = vmatprep.subr.mxu0 0.0
        %248 = vmatpush1.msra.mxu0 0.0
        %249 = vmatprep.subr.mxu0 0.0
        %250 = vmatpush1.msra.mxu0 0.0
        %251 = vmatprep.subr.mxu0 0.0
        %252 = vmatpush1.msra.mxu0 0.0
        %253 = vmatprep.subr.mxu0 0.0
        %254 = vmatpush1.msra.mxu0 0.0
        %255 = vmatprep.subr.mxu0 0.0
        %256 = vmatpush1.msra.mxu0 0.0
        %257 = vmatprep.subr.mxu0 0.0
        %258 = vmatpush1.msra.mxu0 0.0
        %259 = vmatprep.mubr.f32.mxu0 0.0
        %260 = vmatmul.mubr.f32.gmra.mrb[0].mxu0 %v193
        %v261 = vpop.f32.mrb[0].mxu0
        %v262 = vadd.f32 0.0, %v261
        %v263 = vpop.f32.mrb[0].mxu0
        %264 = vdwg.mxu0
        %265 = vst [vmem:[%s188] sm:$0xff] %v262
        %s266 = sand.u32 %s91, 1
        %s267 = scalar_lea.sflag [#allocation4], %s266
        %s268 = sand.u32 %s91, 1
        %s269 = smul.addr %s268, 8
        %s270 = scalar_lea.vmem [#allocation7], %s269
        // Predicated region
        $region37: #{tpu_custom_call.1} parent=27 // pred_check
          %p271 = pneg %p101
        $region38: #{tpu_custom_call.1} parent=27 // pred_check_branch
          %273 = sbr.rel (%p271) target = $region40
        $region39: #{tpu_custom_call.1} parent=27 // pred_region
          %s275 = ssub.s32 128, 128
          %276 = vsyncadd %s267, %s275
          %s277 = sadd.s32 %s25, %s24
          %s278 = smul.addr %s277, 128
          %s279 = scalar_lea.hbm %s2, %s278
          %s281 = sshll.u32 %s270, 4
          %s282 = int_to_ptr.vmem [resolvable:$true] %s281
          %284 = dma.vmem_to_hbm [thread:$0]  %s282, 128, %s279, %s267
        $region40: #{tpu_custom_call.1} parent=27 // pred_fallthru
          _
      $region28: #{tpu_custom_call.1} parent=5 // pred_fallthru
        _
      %p285 = scmp.le.s32.totalorder 2, %s15
      // Predicated region
      $region41: #{tpu_custom_call.1} parent=5 // pred_check
        %p286 = pneg %p285
      $region42: #{tpu_custom_call.1} parent=5 // pred_check_branch
        %288 = sbr.rel (%p286) target = $region44
      $region43: #{tpu_custom_call.1} parent=5 // pred_region
        %s289 = ssub.s32 %s15, 2
        // Predicated region
        $region45: #{tpu_custom_call.1} parent=43 // pred_check
          %p290 = pneg %p107
        $region46: #{tpu_custom_call.1} parent=43 // pred_check_branch
          %292 = sbr.rel (%p290) target = $region48
        $region47: #{tpu_custom_call.1} parent=43 // pred_region
          %s293 = sand.u32 %s92, 1
          %s294 = scalar_lea.sflag [#allocation4], %s293
          %s295 = sand.u32 %s92, 1
          %s296 = smul.addr %s295, 8
          %s297 = scalar_lea.vmem [#allocation7], %s296
          %298 = dma.done %s294, 128
        $region48: #{tpu_custom_call.1} parent=43 // pred_fallthru
          _
      $region44: #{tpu_custom_call.1} parent=5 // pred_fallthru
        _
    $region6: #{tpu_custom_call.1} parent=1 // loop_footer
      %s19 = sadd.s32 1, %s15
    $region7: #{tpu_custom_call.1} parent=1 // loop_footer_branch
      %14 = sbr.rel target = $region3
    $region8: #{tpu_custom_call.1} parent=1 // loop_exit
      _
    %299 = vsyncpa [#allocation3], 1
    %s300 = scalar_lea.sflag [#allocation3], 1
    %301 = vsyncpa %s300, 1
    %302 = vsyncpa [#allocation6], 1
    %s303 = scalar_lea.sflag [#allocation6], 1
    %304 = vsyncpa %s303, 1
    %305 = vsyncpa [#allocation4], 1
    %s306 = scalar_lea.sflag [#allocation4], 1
    %307 = vsyncpa %s306, 1

</llo_original>
